<compile_context>
chip_gen: v7x
topology: tpu7x:2x2x1
jax: 0.10.0
libtpu: 0.0.40
codegen_flags: <defaults>
</compile_context>

<pallas_src>
import functools
import math

import numpy as np
import jax
import jax.numpy as jnp
from jax.experimental import pallas as pl
from jax.experimental.pallas import tpu as pltpu


_INV_SQRT2 = 0.7071067811865476
_GELU_TANH_C = 0.7978845608028654  # sqrt(2/pi)

# Conservative per-kernel live-VMEM budget used for tile selection (fits inside
# the scoped-VMEM limit we request below on every generation, incl. v7x 64 MiB).
_VMEM_TILE_BUDGET = 26 * 1024 * 1024
_VMEM_LIMIT_BYTES = 48 * 1024 * 1024


# ---------------------------------------------------------------------------
# Tiling helpers (VMEM-budget aware)
# ---------------------------------------------------------------------------

def _pick_tiles(M, K, N, x_bytes, w_bytes, o_bytes, res_bytes):
    """Pick (TM, TK) for the fused linear kernel.

    TK: only tile K when a 128-aligned candidate divides it evenly (OOB reads in
    the contracted dim would corrupt the accumulation); prefer 256-multiples for
    the 256-wide v6e/v7x MXU.
    TM: largest multiple of 8 whose double-buffered working set fits the budget.
    """
    tk = K
    if K > 512:
        for cand in (512, 256, 384, 128):
            if K % cand == 0:
                tk = cand
                break

    if M % 8 != 0:
        # TODO(synk): mask non-multiple-of-8 row tails instead of one big block.
        return M, tk

    fixed = 2 * tk * N * w_bytes + 8 * N * 4            # weight slab + bias/LN rows
    per_row = (2 * tk * x_bytes                          # x tile (double buffered)
               + 2 * N * o_bytes                         # out tile
               + N * 4                                   # f32 accumulator
               + 2 * N * res_bytes)                      # residual tile
    cap = (_VMEM_TILE_BUDGET - fixed) // max(per_row, 1)
    tm_max = 1024 if N <= 1024 else 512
    tm = max(8, min(M, tm_max, cap))
    tm = max(8, (tm // 8) * 8)
    if tm >= M:
        tm = M
    return tm, tk


# ---------------------------------------------------------------------------
# Fused linear kernel: y = [res +] [LN] ( act( x @ w + b ) )
# ---------------------------------------------------------------------------

def _linear_kernel(x_ref, w_ref, *rest, act, has_bias, has_ln, has_res,
                   multi_k, use_scratch):
    idx = 0
    b_ref = g_ref = bb_ref = r_ref = None
    if has_bias:
        b_ref = rest[idx]; idx += 1
    if has_ln:
        g_ref, bb_ref = rest[idx], rest[idx + 1]; idx += 2
    if has_res:
        r_ref = rest[idx]; idx += 1
    o_ref = rest[idx]; idx += 1
    # f32 output blocks are resident across the K axis -> accumulate in place;
    # bf16 outputs need an f32 scratch accumulator.
    acc_ref = rest[idx] if use_scratch else o_ref

    # bf16 MXU operands, f32 accumulation.
    part = jnp.dot(x_ref[...].astype(jnp.bfloat16),
                   w_ref[...].astype(jnp.bfloat16),
                   preferred_element_type=jnp.float32)

    def _epilogue(y):
        if b_ref is not None:
            y = y + b_ref[...]
        if act == "relu":
            y = jnp.maximum(y, 0.0)
        elif act == "gelu_erf":            # exact GELU, matches torch.nn.GELU()
            y = 0.5 * y * (1.0 + jax.lax.erf(y * _INV_SQRT2))
        elif act == "gelu_tanh":           # fallback if erf does not lower
            y = 0.5 * y * (1.0 + jnp.tanh(_GELU_TANH_C * (y + 0.044715 * y * y * y)))
        if g_ref is not None:
            mu = jnp.mean(y, axis=-1, keepdims=True)
            yc = y - mu
            var = jnp.mean(yc * yc, axis=-1, keepdims=True)   # biased var (torch LN)
            y = yc * jax.lax.rsqrt(var + 1e-5) * g_ref[...] + bb_ref[...]
        if r_ref is not None:
            y = y + r_ref[...]
        o_ref[...] = y.astype(o_ref.dtype)

    if not multi_k:
        _epilogue(part)
    else:
        k = pl.program_id(1)

        @pl.when(k == 0)
        def _():
            acc_ref[...] = jnp.zeros_like(acc_ref)

        acc_ref[...] += part

        @pl.when(k == pl.num_programs(1) - 1)
        def _():
            _epilogue(acc_ref[...])


@functools.partial(jax.jit, static_argnames=("act", "out_dtype"))
def linear_pallas(x, w_kn, b=None, act=None, ln_g=None, ln_b=None, residual=None,
                  out_dtype=jnp.float32):
    """x: (M, K), w_kn: (K, N) (bf16 in HBM).  Optional fused GELU/ReLU,
    LayerNorm (over the full output row) and residual add.  Tiled over M and K,
    bf16 MXU inputs with f32 accumulation / epilogue."""
    M, K = x.shape
    N = w_kn.shape[1]
    has_bias = b is not None
    has_ln = ln_g is not None
    has_res = residual is not None
    out_dt = jnp.dtype(out_dtype)

    tm, tk = _pick_tiles(M, K, N, x.dtype.itemsize, w_kn.dtype.itemsize,
                         out_dt.itemsize, 4 if has_res else 0)
    gm, gk = pl.cdiv(M, tm), pl.cdiv(K, tk)
    multi_k = gk > 1
    use_scratch = multi_k and out_dt != jnp.dtype(jnp.float32)

    in_specs = [
        pl.BlockSpec((tm, tk), lambda i, k: (i, k)),
        pl.BlockSpec((tk, N), lambda i, k: (k, 0)),
    ]
    args = [x, w_kn]
    if has_bias:
        in_specs.append(pl.BlockSpec((1, N), lambda i, k: (0, 0)))
        args.append(b.reshape(1, N))
    if has_ln:
        in_specs += [pl.BlockSpec((1, N), lambda i, k: (0, 0)),
                     pl.BlockSpec((1, N), lambda i, k: (0, 0))]
        args += [ln_g.reshape(1, N), ln_b.reshape(1, N)]
    if has_res:
        in_specs.append(pl.BlockSpec((tm, N), lambda i, k: (i, 0)))
        args.append(residual)

    kernel = functools.partial(
        _linear_kernel, act=act, has_bias=has_bias, has_ln=has_ln,
        has_res=has_res, multi_k=multi_k, use_scratch=use_scratch)

    bytes_accessed = (x.size * x.dtype.itemsize
                      + w_kn.size * w_kn.dtype.itemsize
                      + M * N * out_dt.itemsize
                      + (M * N * 4 if has_res else 0))
    return pl.pallas_call(
        kernel,
        out_shape=jax.ShapeDtypeStruct((M, N), out_dt),
        grid=(gm, gk),
        in_specs=in_specs,
        out_specs=pl.BlockSpec((tm, N), lambda i, k: (i, 0)),
        scratch_shapes=[pltpu.VMEM((tm, N), jnp.float32)] if use_scratch else [],
        compiler_params=pltpu.CompilerParams(
            dimension_semantics=("parallel", "arbitrary"),
            vmem_limit_bytes=_VMEM_LIMIT_BYTES),
        cost_estimate=pl.CostEstimate(flops=2 * M * K * N, transcendentals=0,
                                      bytes_accessed=bytes_accessed),
    )(*args)


# ---------------------------------------------------------------------------
# Swin-V2 cosine window attention
# ---------------------------------------------------------------------------

def _window_attn_kernel(*refs, num_heads, head_dim, dim, has_mask):
    if has_mask:
        qkv_ref, bias_ref, mask_ref, scale_ref, o_ref = refs
    else:
        qkv_ref, bias_ref, scale_ref, o_ref = refs
        mask_ref = None

    for h in range(num_heads):
        lo = h * head_dim
        q = qkv_ref[:, :, lo:lo + head_dim].astype(jnp.float32)
        k = qkv_ref[:, :, dim + lo:dim + lo + head_dim].astype(jnp.float32)
        v = qkv_ref[:, :, 2 * dim + lo:2 * dim + lo + head_dim].astype(jnp.bfloat16)
        # F.normalize(..., dim=-1, eps=1e-12) in f32
        qn = q * jax.lax.rsqrt(jnp.maximum(jnp.sum(q * q, -1, keepdims=True), 1e-24))
        kn = k * jax.lax.rsqrt(jnp.maximum(jnp.sum(k * k, -1, keepdims=True), 1e-24))
        # cosine-sim scores: bf16 MXU operands, f32 results
        s = jnp.einsum("wnd,wmd->wnm",
                       qn.astype(jnp.bfloat16), kn.astype(jnp.bfloat16),
                       preferred_element_type=jnp.float32)
        s = s * scale_ref[h]                 # exp(clamped logit_scale), per head
        s = s + bias_ref[h]                  # relative-position bias (N, N)
        if mask_ref is not None:
            s = s + mask_ref[...]            # shift mask (WT, N, N)
        s = s - jnp.max(s, axis=-1, keepdims=True)
        p = jnp.exp(s)
        p = p * pl.reciprocal(jnp.sum(p, axis=-1, keepdims=True), approx=True)
        out_h = jnp.einsum("wnm,wmd->wnd", p.astype(jnp.bfloat16), v,
                           preferred_element_type=jnp.float32)
        o_ref[:, :, lo:lo + head_dim] = out_h.astype(o_ref.dtype)


def _windows_per_step(n_windows, batch):
    """Largest divisor of n_windows that still yields >= 4 grid steps
    (megacore sharding + DMA/compute pipelining)."""
    best = 1
    for d in range(1, n_windows + 1):
        if n_windows % d == 0 and (batch * n_windows) // d >= 4:
            best = d
    return best


@functools.partial(jax.jit, static_argnames=("num_heads", "head_dim", "dim",
                                             "windows_per_step", "n_windows"))
def window_attention_pallas(qkv, bias, scale, mask, *, num_heads, head_dim, dim,
                            windows_per_step, n_windows):
    """qkv: (B*nW, N, 3C) bf16; bias: (nH, N, N) f32; scale: (nH,) f32;
    mask: (nW, N, N) f32 or None.  Returns (B*nW, N, C) bf16 with heads merged."""
    BnW, N, C3 = qkv.shape
    wt = windows_per_step
    has_mask = mask is not None
    kernel = functools.partial(_window_attn_kernel, num_heads=num_heads,
                               head_dim=head_dim, dim=dim, has_mask=has_mask)

    in_specs = [
        pl.BlockSpec((wt, N, C3), lambda i: (i, 0, 0)),
        pl.BlockSpec((num_heads, N, N), lambda i: (0, 0, 0)),
    ]
    args = [qkv, bias]
    if has_mask:
        mask_blocks = n_windows // wt
        in_specs.append(pl.BlockSpec((wt, N, N),
                                     lambda i: (i % mask_blocks, 0, 0)))
        args.append(mask)
    in_specs.append(pl.BlockSpec(memory_space=pltpu.MemorySpace.SMEM))
    args.append(scale)

    flops = BnW * num_heads * 4 * N * N * head_dim
    bytes_accessed = (qkv.size * qkv.dtype.itemsize + bias.size * 4
                      + (mask.size * 4 if has_mask else 0) + BnW * N * dim * 2)
    return pl.pallas_call(
        kernel,
        out_shape=jax.ShapeDtypeStruct((BnW, N, dim), jnp.bfloat16),
        grid=(BnW // wt,),
        in_specs=in_specs,
        out_specs=pl.BlockSpec((wt, N, dim), lambda i: (i, 0, 0)),
        compiler_params=pltpu.CompilerParams(
            dimension_semantics=("parallel",),
            vmem_limit_bytes=_VMEM_LIMIT_BYTES),
        cost_estimate=pl.CostEstimate(flops=flops,
                                      transcendentals=BnW * num_heads * N * N,
                                      bytes_accessed=bytes_accessed),
    )(*args)


# ---------------------------------------------------------------------------
# GELU flavour probe (exact erf GELU if it lowers in Mosaic, else tanh approx)
# ---------------------------------------------------------------------------

def _erf_probe_kernel(x_ref, o_ref):
    o_ref[...] = jax.lax.erf(x_ref[...])


@functools.lru_cache(maxsize=1)
def _gelu_act_kind():
    try:
        f = pl.pallas_call(_erf_probe_kernel,
                           out_shape=jax.ShapeDtypeStruct((8, 128), jnp.float32))
        jax.block_until_ready(f(jnp.ones((8, 128), jnp.float32)))
        return "gelu_erf"
    except Exception:
        # TODO(synk): exact-erf GELU falls back to tanh approximation if lax.erf
        # has no Mosaic lowering on this jax version.
        return "gelu_tanh"


# ---------------------------------------------------------------------------
# Static (numpy) helpers: relative-position tables and shifted-window masks
# ---------------------------------------------------------------------------

def _relative_coords_table(window_size):
    wh, ww = window_size
    rh = np.arange(-(wh - 1), wh, dtype=np.float32)
    rw = np.arange(-(ww - 1), ww, dtype=np.float32)
    tbl = np.stack(np.meshgrid(rh, rw, indexing="ij"), axis=-1)
    tbl[..., 0] /= max(wh - 1, 1)
    tbl[..., 1] /= max(ww - 1, 1)
    tbl *= 8.0
    tbl = np.sign(tbl) * np.log2(np.abs(tbl) + 1.0) / 3.0
    return tbl.reshape(-1, 2).astype(np.float32)


def _relative_position_index(window_size):
    wh, ww = window_size
    coords = np.stack(np.meshgrid(np.arange(wh), np.arange(ww), indexing="ij"))
    cf = coords.reshape(2, -1)
    rel = (cf[:, :, None] - cf[:, None, :]).transpose(1, 2, 0)
    rel[..., 0] += wh - 1
    rel[..., 1] += ww - 1
    rel[..., 0] *= 2 * ww - 1
    return rel.sum(-1).reshape(-1).astype(np.int32)


@functools.lru_cache(maxsize=None)
def _shift_attn_mask(pad_H, pad_W, window_size, shift_size):
    wsh, wsw = window_size
    ssh, ssw = shift_size
    nW = (pad_H // wsh) * (pad_W // wsw)
    N = wsh * wsw
    if ssh == 0 and ssw == 0:
        return np.zeros((nW, N, N), np.float32)
    img = np.zeros((pad_H, pad_W), np.float32)
    cnt = 0.0
    for h in ((0, -wsh), (-wsh, -ssh), (-ssh, None)):
        for w in ((0, -wsw), (-wsw, -ssw), (-ssw, None)):
            img[h[0]:h[1], w[0]:w[1]] = cnt
            cnt += 1.0
    m = img.reshape(pad_H // wsh, wsh, pad_W // wsw, wsw)
    m = m.transpose(0, 2, 1, 3).reshape(nW, N)
    diff = m[:, None, :] - m[:, :, None]
    return np.where(diff != 0, -100.0, 0.0).astype(np.float32)


# ---------------------------------------------------------------------------
# Swin-V2 forward (glue around the Pallas kernels)
# ---------------------------------------------------------------------------

def _rel_pos_bias(attn_p, window_size, num_heads):
    """CPB MLP -> 16*sigmoid, gathered to (nH, N, N).  Tiny (K=2), plain JAX."""
    tbl = attn_p["cpb_table"]                                  # (T, 2)
    h = jnp.maximum(tbl @ attn_p["cpb_w1_kn"] + attn_p["cpb_b1"], 0.0)
    h = h @ attn_p["cpb_w2_kn"]                                # (T, nH), no bias
    N = window_size[0] * window_size[1]
    bias = h[attn_p["rel_index"]].reshape(N, N, num_heads).transpose(2, 0, 1)
    return 16.0 * jax.nn.sigmoid(bias)


def shifted_window_attention_v2(x, p, window_size, shift_size, num_heads,
                                ln_g, ln_b):
    """Returns x + norm1(shifted_window_attention(x)); LN + residual fused into
    the proj kernel (valid since LayerNorm is per-token over the channel dim)."""
    B, H, W, C = x.shape
    wsh, wsw = window_size
    pad_r = (wsw - W % wsw) % wsw
    pad_b = (wsh - H % wsh) % wsh
    xp = jnp.pad(x, ((0, 0), (0, pad_b), (0, pad_r), (0, 0)))
    pH, pW = H + pad_b, W + pad_r
    ssh, ssw = shift_size
    if wsh >= pH:
        ssh = 0
    if wsw >= pW:
        ssw = 0
    shifted = ssh > 0 or ssw > 0
    if shifted:
        xp = jnp.roll(xp, shift=(-ssh, -ssw), axis=(1, 2))

    nW = (pH // wsh) * (pW // wsw)
    N = wsh * wsw
    xw = xp.reshape(B, pH // wsh, wsh, pW // wsw, wsw, C)
    xw = xw.transpose(0, 1, 3, 2, 4, 5).reshape(B * nW, N, C)
    xw_flat = xw.reshape(B * nW * N, C)

    # qkv projection -> bf16 activations consumed by the attention matmuls
    qkv = linear_pallas(xw_flat, p["qkv_w_kn"], p["qkv_b"],
                        out_dtype=jnp.bfloat16).reshape(B * nW, N, 3 * C)

    bias = _rel_pos_bias(p, window_size, num_heads)            # (nH, N, N) f32
    mask = (jnp.asarray(_shift_attn_mask(pH, pW, (wsh, wsw), (ssh, ssw)))
            if shifted else None)
    scale = jnp.exp(jnp.minimum(p["logit_scale"], math.log(100.0)))
    wt = _windows_per_step(nW, B)

    o = window_attention_pallas(qkv, bias, scale, mask, num_heads=num_heads,
                                head_dim=C // num_heads, dim=C,
                                windows_per_step=wt, n_windows=nW)

    # proj + LayerNorm(norm1) + residual(xw) fused in one kernel
    o = linear_pallas(o.reshape(B * nW * N, C), p["proj_w_kn"], p["proj_b"],
                      ln_g=ln_g, ln_b=ln_b, residual=xw_flat)

    o = o.reshape(B, pH // wsh, pW // wsw, wsh, wsw, C)
    o = o.transpose(0, 1, 3, 2, 4, 5).reshape(B, pH, pW, C)
    if shifted:
        o = jnp.roll(o, shift=(ssh, ssw), axis=(1, 2))
    return o[:, :H, :W, :]


def swin_block_v2(x, p, window_size, shift_size, num_heads):
    """SwinTransformerBlockV2 (post-norm); eval mode (stochastic depth/dropout = id)."""
    B, H, W, C = x.shape
    # x = x + norm1(attn(x))   (residual + norm1 fused into the attention proj)
    x = shifted_window_attention_v2(x, p["attn"], window_size, shift_size,
                                    num_heads, p["norm1_g"], p["norm1_b"])
    # x = x + norm2(mlp(x))    (GELU fused into fc1; norm2 + residual fused into fc2)
    xf = x.reshape(-1, C)
    h = linear_pallas(xf, p["fc1_w_kn"], p["fc1_b"], act=_gelu_act_kind(),
                      out_dtype=jnp.bfloat16)
    y = linear_pallas(h, p["fc2_w_kn"], p["fc2_b"],
                      ln_g=p["norm2_g"], ln_b=p["norm2_b"], residual=xf)
    return y.reshape(B, H, W, C)


def patch_embed(x_nchw, p):
    """Conv2d(3, E, k=4, s=4) as patch-extract + fused matmul+LayerNorm."""
    B, Cin, H, W = x_nchw.shape
    ph = pw = 4
    x = jnp.transpose(x_nchw, (0, 2, 3, 1))                        # NHWC
    x = x.reshape(B, H // ph, ph, W // pw, pw, Cin)
    x = x.transpose(0, 1, 3, 2, 4, 5).reshape(-1, ph * pw * Cin)
    y = linear_pallas(x, p["conv_w_kn"], p["conv_b"],
                      ln_g=p["ln_g"], ln_b=p["ln_b"])
    E = p["ln_g"].shape[0]
    return y.reshape(B, H // ph, W // pw, E)


def patch_merging_v2(x, p):
    B, H, W, C = x.shape
    x = jnp.pad(x, ((0, 0), (0, H % 2), (0, W % 2), (0, 0)))
    x0 = x[:, 0::2, 0::2, :]
    x1 = x[:, 1::2, 0::2, :]
    x2 = x[:, 0::2, 1::2, :]
    x3 = x[:, 1::2, 1::2, :]
    xc = jnp.concatenate([x0, x1, x2, x3], axis=-1)                # (B, H2, W2, 4C)
    _, H2, W2, C4 = xc.shape
    # Linear(4C, 2C, bias=False) + LayerNorm fused; no zero-bias DMA
    y = linear_pallas(xc.reshape(-1, C4), p["red_w_kn"], None,
                      ln_g=p["ln_g"], ln_b=p["ln_b"])
    return y.reshape(B, H2, W2, C4 // 2)


def swin_forward(x_nchw, params, cfg):
    """Returns [stage1, stage2, stage3, stage4] NHWC feature maps, like Swin.forward."""
    window = tuple(cfg["window_size"])
    outs = []
    x = patch_embed(x_nchw, params["embed"])
    for s in range(4):
        if s > 0:
            x = patch_merging_v2(x, params["stages"][s]["merge"])
        for i, bp in enumerate(params["stages"][s]["blocks"]):
            shift = [0 if i % 2 == 0 else w // 2 for w in window]
            x = swin_block_v2(x, bp, window, shift, cfg["num_heads"][s])
        outs.append(x)
    return outs


# ---------------------------------------------------------------------------
# Deterministic synthetic parameters (linear weights stored bf16 for the MXU)
# ---------------------------------------------------------------------------

def init_params(key, cfg):
    E = cfg["embed_dim"]
    depths = cfg["depths"]
    heads = cfg["num_heads"]
    window = tuple(cfg["window_size"])
    cpb_hidden = cfg["cpb_hidden"]

    keys = iter(jax.random.split(key, 4096))

    def w(shape, scale=0.02, dtype=jnp.float32):
        return (scale * jax.random.normal(next(keys), shape,
                                          dtype=jnp.float32)).astype(dtype)

    bf16 = jnp.bfloat16
    tbl = jnp.asarray(_relative_coords_table(window))
    ridx = jnp.asarray(_relative_position_index(window))

    conv_w = w((E, 3, 4, 4))
    conv_w_kn = jnp.transpose(conv_w, (2, 3, 1, 0)).reshape(4 * 4 * 3, E).astype(bf16)

    params = {
        "embed": {
            "conv_w_kn": conv_w_kn,
            "conv_b": w((E,)),
            "ln_g": jnp.ones((E,), jnp.float32),
            "ln_b": jnp.zeros((E,), jnp.float32),
        },
        "stages": [],
    }

    for s in range(4):
        dim = E * (2 ** s)
        nh = heads[s]
        stage = {"blocks": []}
        if s > 0:
            din = E * (2 ** (s - 1))
            stage["merge"] = {
                "red_w_kn": w((4 * din, 2 * din), dtype=bf16),
                "ln_g": jnp.ones((2 * din,), jnp.float32),
                "ln_b": jnp.zeros((2 * din,), jnp.float32),
            }
        for _ in range(depths[s]):
            qkv_b = w((3 * dim,))
            qkv_b = qkv_b.at[dim:2 * dim].set(0.0)   # Swin-V2 zeroes the k bias
            blk = {
                "attn": {
                    "qkv_w_kn": w((dim, 3 * dim), dtype=bf16),
                    "qkv_b": qkv_b,
                    "proj_w_kn": w((dim, dim), dtype=bf16),
                    "proj_b": w((dim,)),
                    "logit_scale": jnp.full((nh,), math.log(10.0), jnp.float32),
                    "cpb_w1_kn": w((2, cpb_hidden)),
                    "cpb_b1": w((cpb_hidden,)),
                    "cpb_w2_kn": w((cpb_hidden, nh)),
                    "cpb_table": tbl,
                    "rel_index": ridx,
                },
                "norm1_g": jnp.ones((dim,), jnp.float32),
                "norm1_b": jnp.zeros((dim,), jnp.float32),
                "norm2_g": jnp.ones((dim,), jnp.float32),
                "norm2_b": jnp.zeros((dim,), jnp.float32),
                "fc1_w_kn": w((dim, 4 * dim), dtype=bf16),
                "fc1_b": w((4 * dim,)),
                "fc2_w_kn": w((4 * dim, dim), dtype=bf16),
                "fc2_b": w((dim,)),
            }
            stage["blocks"].append(blk)
        params["stages"].append(stage)
    return params


if __name__ == "__main__":
    # Real swin_v2_t config: embed_dim=96, depths=(2,2,6,2), heads=(3,6,12,24),
    # window=(8,8), cpb_hidden=512.  The kernels are dimension-agnostic; for a
    # small, fast demo we use a structurally identical scaled-down config.
    cfg = dict(embed_dim=32, depths=(2, 2, 2, 2), num_heads=(2, 4, 8, 16),
               window_size=(4, 4), cpb_hidden=128)

    params = init_params(jax.random.PRNGKey(42), cfg)
    x = jax.random.normal(jax.random.PRNGKey(0), (2, 3, 32, 32), dtype=jnp.float32)

    outs = swin_forward(x, params, cfg)
    outs = jax.block_until_ready(outs)

    expected = [(2, 8, 8, 32), (2, 4, 4, 64), (2, 2, 2, 128), (2, 1, 1, 256)]
    assert [tuple(o.shape) for o in outs] == expected, [o.shape for o in outs]
    assert all(bool(jnp.all(jnp.isfinite(o))) for o in outs)
    print("KERNEL_OK")
</pallas_src>

<mosaic_0001>
module attributes {stable_mosaic.version = 11 : i64} {
  func.func @_linear_kernel(%arg0: i32, %arg1: i32, %arg2: memref<128x48xf32, #tpu.memory_space<vmem>>, %arg3: memref<48x32xbf16, #tpu.memory_space<vmem>>, %arg4: memref<1x32xf32, #tpu.memory_space<vmem>>, %arg5: memref<1x32xf32, #tpu.memory_space<vmem>>, %arg6: memref<1x32xf32, #tpu.memory_space<vmem>>, %arg7: memref<128x32xf32, #tpu.memory_space<vmem>>) attributes {dimension_semantics = [#tpu.dimension_semantics<parallel>, #tpu.dimension_semantics<arbitrary>], iteration_bounds = array<i64: 1, 1>, scalar_prefetch = 0 : i64, scratch_operands = 0 : i64, tpu.core_type = #tpu.core_type<tc>, window_params = [{transform_indices = @transform_0, window_bounds = array<i64: 128, 48>}, {transform_indices = @transform_1, window_bounds = array<i64: 48, 32>}, {pipeline_mode = #tpu.pipeline_mode<synchronous>, transform_indices = @transform_2, window_bounds = array<i64: 1, 32>}, {pipeline_mode = #tpu.pipeline_mode<synchronous>, transform_indices = @transform_3, window_bounds = array<i64: 1, 32>}, {pipeline_mode = #tpu.pipeline_mode<synchronous>, transform_indices = @transform_4, window_bounds = array<i64: 1, 32>}, {transform_indices = @transform_5, window_bounds = array<i64: 128, 32>}]} {
    %c0 = arith.constant 0 : index
    %c0_0 = arith.constant 0 : index
    %0 = vector.load %arg2[%c0, %c0_0] : memref<128x48xf32, #tpu.memory_space<vmem>>, vector<128x48xf32>
    %1 = arith.truncf %0 : vector<128x48xf32> to vector<128x48xbf16>
    %c0_1 = arith.constant 0 : index
    %c0_2 = arith.constant 0 : index
    %2 = vector.load %arg3[%c0_1, %c0_2] : memref<48x32xbf16, #tpu.memory_space<vmem>>, vector<48x32xbf16>
    %cst = arith.constant dense<0.000000e+00> : vector<128x32xf32>
    %3 = tpu.matmul %1, %2, %cst {dimension_numbers = #tpu.dot_dimension_numbers<[1], [0], [0], [1], [0, 0, 1, 1], [], []>} : vector<128x48xbf16>, vector<48x32xbf16>, vector<128x32xf32> -> vector<128x32xf32>
    %c0_3 = arith.constant 0 : index
    %c0_4 = arith.constant 0 : index
    %4 = vector.load %arg4[%c0_3, %c0_4] : memref<1x32xf32, #tpu.memory_space<vmem>>, vector<1x32xf32>
    %5 = vector.broadcast %4 : vector<1x32xf32> to vector<128x32xf32>
    %6 = arith.addf %3, %5 : vector<128x32xf32>
    %cst_5 = arith.constant dense<0.000000e+00> : vector<128xf32>
    %7 = vector.multi_reduction <add>, %6, %cst_5 [1] : vector<128x32xf32> to vector<128xf32>
    %8 = vector.shape_cast %7 : vector<128xf32> to vector<128x1xf32>
    %cst_6 = arith.constant 3.200000e+01 : f32
    %9 = vector.broadcast %cst_6 : f32 to vector<128x1xf32>
    %10 = arith.divf %8, %9 : vector<128x1xf32>
    %11 = vector.broadcast %10 : vector<128x1xf32> to vector<128x32xf32>
    %12 = arith.subf %6, %11 : vector<128x32xf32>
    %13 = arith.mulf %12, %12 : vector<128x32xf32>
    %cst_7 = arith.constant dense<0.000000e+00> : vector<128xf32>
    %14 = vector.multi_reduction <add>, %13, %cst_7 [1] : vector<128x32xf32> to vector<128xf32>
    %15 = vector.shape_cast %14 : vector<128xf32> to vector<128x1xf32>
    %cst_8 = arith.constant 3.200000e+01 : f32
    %16 = vector.broadcast %cst_8 : f32 to vector<128x1xf32>
    %17 = arith.divf %15, %16 : vector<128x1xf32>
    %cst_9 = arith.constant 9.99999974E-6 : f32
    %18 = vector.broadcast %cst_9 : f32 to vector<128x1xf32>
    %19 = arith.addf %17, %18 : vector<128x1xf32>
    %20 = math.rsqrt %19 : vector<128x1xf32>
    %21 = vector.broadcast %20 : vector<128x1xf32> to vector<128x32xf32>
    %22 = arith.mulf %12, %21 : vector<128x32xf32>
    %c0_10 = arith.constant 0 : index
    %c0_11 = arith.constant 0 : index
    %23 = vector.load %arg5[%c0_10, %c0_11] : memref<1x32xf32, #tpu.memory_space<vmem>>, vector<1x32xf32>
    %24 = vector.broadcast %23 : vector<1x32xf32> to vector<128x32xf32>
    %25 = arith.mulf %22, %24 : vector<128x32xf32>
    %c0_12 = arith.constant 0 : index
    %c0_13 = arith.constant 0 : index
    %26 = vector.load %arg6[%c0_12, %c0_13] : memref<1x32xf32, #tpu.memory_space<vmem>>, vector<1x32xf32>
    %27 = vector.broadcast %26 : vector<1x32xf32> to vector<128x32xf32>
    %28 = arith.addf %25, %27 : vector<128x32xf32>
    %c0_14 = arith.constant 0 : index
    %c0_15 = arith.constant 0 : index
    %29 = vector.load %arg7[%c0_14, %c0_15] : memref<128x32xf32, #tpu.memory_space<vmem>>, vector<128x32xf32>
    tpu.vector_store %arg7[%c0_14, %c0_15], %28 {strides = array<i32>} : memref<128x32xf32, #tpu.memory_space<vmem>>, vector<128x32xf32>,
    return
  }
  func.func @transform_0(%arg0: i32, %arg1: i32) -> (i32, i32) {
    %c0_i32 = arith.constant 0 : i32
    return %arg0, %arg1 : i32, i32
  }
  func.func @transform_1(%arg0: i32, %arg1: i32) -> (i32, i32) {
    %c0_i32 = arith.constant 0 : i32
    %c0_i32_0 = arith.constant 0 : i32
    return %arg1, %c0_i32 : i32, i32
  }
  func.func @transform_2(%arg0: i32, %arg1: i32) -> (i32, i32) {
    %c0_i32 = arith.constant 0 : i32
    %c0_i32_0 = arith.constant 0 : i32
    %c0_i32_1 = arith.constant 0 : i32
    return %c0_i32, %c0_i32_0 : i32, i32
  }
  func.func @transform_3(%arg0: i32, %arg1: i32) -> (i32, i32) {
    %c0_i32 = arith.constant 0 : i32
    %c0_i32_0 = arith.constant 0 : i32
    %c0_i32_1 = arith.constant 0 : i32
    return %c0_i32, %c0_i32_0 : i32, i32
  }
  func.func @transform_4(%arg0: i32, %arg1: i32) -> (i32, i32) {
    %c0_i32 = arith.constant 0 : i32
    %c0_i32_0 = arith.constant 0 : i32
    %c0_i32_1 = arith.constant 0 : i32
    return %c0_i32, %c0_i32_0 : i32, i32
  }
  func.func @transform_5(%arg0: i32, %arg1: i32) -> (i32, i32) {
    %c0_i32 = arith.constant 0 : i32
    %c0_i32_0 = arith.constant 0 : i32
    return %arg0, %c0_i32 : i32, i32
  }
}

</mosaic_0001>

<llo_original>
// kernel: linear_pallas.1
$region0: #{linear_pallas.1}
  #allocation0 [shape = 'u32[]', space=smem, size = 0x4, offset = 0x4, fixed_abs, tag = 'smem constant byte address 0x4 - core index']
  #allocation1 [shape = 'u32[144,128]{1,0:T(1,128)}', space=vmem, size = 0x12000, scoped, tag = 'internal scratch']
  %s0 = inlined_call_operand.vmem [shape: f32[128,48], index: 0, kind: input, shape index: {}]
  %s1 = inlined_call_operand.vmem [shape: bf16[48,32], index: 1, kind: input, shape index: {}]
  %s2 = inlined_call_operand.vmem [shape: f32[1,32], index: 2, kind: input, shape index: {}]
  %s3 = inlined_call_operand.vmem [shape: f32[1,32], index: 3, kind: input, shape index: {}]
  %s4 = inlined_call_operand.vmem [shape: f32[1,32], index: 4, kind: input, shape index: {}]
  %s5 = inlined_call_operand.vmem [shape: f32[128,32], index: 5, kind: output, shape index: {}]
  %s6 = sld [smem:[#allocation0]]
  $region30: #{linear_pallas.1} parent=0
    _
  %s8 = ssub.s32 1, %s6
  %s9 = scalar_select 0, %s8, %s6
  // Predicated region
  $region2: #{linear_pallas.1} parent=0 // pred_check
    _
  $region3: #{linear_pallas.1} parent=0 // pred_check_branch
    %11 = sbr.rel (0) target = $region5
  $region4: #{linear_pallas.1} parent=0 // pred_region
    _
  $region5: #{linear_pallas.1} parent=0 // pred_fallthru
    _
  // Predicated region
  $region6: #{linear_pallas.1} parent=0 // pred_check
    _
  $region7: #{linear_pallas.1} parent=0 // pred_check_branch
    %13 = sbr.rel (0) target = $region9
  $region8: #{linear_pallas.1} parent=0 // pred_region
    _
  $region9: #{linear_pallas.1} parent=0 // pred_fallthru
    _
  // Predicated region
  $region10: #{linear_pallas.1} parent=0 // pred_check
    _
  $region11: #{linear_pallas.1} parent=0 // pred_check_branch
    %15 = sbr.rel (0) target = $region13
  $region12: #{linear_pallas.1} parent=0 // pred_region
    _
  $region13: #{linear_pallas.1} parent=0 // pred_fallthru
    _
  // Predicated region
  $region14: #{linear_pallas.1} parent=0 // pred_check
    _
  $region15: #{linear_pallas.1} parent=0 // pred_check_branch
    %17 = sbr.rel (0) target = $region17
  $region16: #{linear_pallas.1} parent=0 // pred_region
    _
  $region17: #{linear_pallas.1} parent=0 // pred_fallthru
    _
  // Predicated region
  $region18: #{linear_pallas.1} parent=0 // pred_check
    _
  $region19: #{linear_pallas.1} parent=0 // pred_check_branch
    %19 = sbr.rel (0) target = $region21
  $region20: #{linear_pallas.1} parent=0 // pred_region
    _
  $region21: #{linear_pallas.1} parent=0 // pred_fallthru
    _
  %v21 = vld [vmem:[%s0] sm:$0xff]
  %v22 = vld [vmem:[%s0 + $0x8] sm:$0xff]
  %v23 = vld [vmem:[%s0 + $0x10] sm:$0xff]
  %v24 = vld [vmem:[%s0 + $0x18] sm:$0xff]
  %v25 = vld [vmem:[%s0 + $0x20] sm:$0xff]
  %v26 = vld [vmem:[%s0 + $0x28] sm:$0xff]
  %v27 = vld [vmem:[%s0 + $0x30] sm:$0xff]
  %v28 = vld [vmem:[%s0 + $0x38] sm:$0xff]
  %v29 = vld [vmem:[%s0 + $0x40] sm:$0xff]
  %v30 = vld [vmem:[%s0 + $0x48] sm:$0xff]
  %v31 = vld [vmem:[%s0 + $0x50] sm:$0xff]
  %v32 = vld [vmem:[%s0 + $0x58] sm:$0xff]
  %v33 = vld [vmem:[%s0 + $0x60] sm:$0xff]
  %v34 = vld [vmem:[%s0 + $0x68] sm:$0xff]
  %v35 = vld [vmem:[%s0 + $0x70] sm:$0xff]
  %v36 = vld [vmem:[%s0 + $0x78] sm:$0xff]
  %v37 = vpack.c.bf16 %v22, %v21
  %v38 = vpack.c.bf16 %v24, %v23
  %v39 = vpack.c.bf16 %v26, %v25
  %v40 = vpack.c.bf16 %v28, %v27
  %v41 = vpack.c.bf16 %v30, %v29
  %v42 = vpack.c.bf16 %v32, %v31
  %v43 = vpack.c.bf16 %v34, %v33
  %v44 = vpack.c.bf16 %v36, %v35
  %v45 = vld [vmem:[%s1] sm:$0xf]
  %v46 = vld [vmem:[%s1 + $0x4] sm:$0xf]
  %v47 = vld [vmem:[%s1 + $0x8] sm:$0xf]
  %v48 = vld [vmem:[%s1 + $0xc] sm:$0xf]
  %v49 = vld [vmem:[%s1 + $0x10] sm:$0xf]
  %v50 = vld [vmem:[%s1 + $0x14] sm:$0xf]
  %v51 = vld [vmem:[%s2] sm:$0x1]
  %v53 = vlaneseq
  %v54 = vshrl.u32 %v53, 7
  %v55 = vsub.s32 0, %v54
  %v56 = vrot.slane %v51, %v55
  %v64 = vunpack.c.l.b16 %v45
  %v65 = vunpack.c.l.b16 %v46
  %v66 = vunpack.c.l.b16 %v47
  %v67 = vunpack.c.l.b16 %v48
  %v68 = vunpack.c.l.b16 %v49
  %v69 = vunpack.c.l.b16 %v50
  %v70 = vpack.c.b16 %v65, %v64
  %v71 = vpack.c.b16 %v67, %v66
  %v72 = vpack.c.b16 %v69, %v68
  %vm76 = vcmask 392192
  %v78 = vsel %vm76, %v37, 0
  %v81 = vsel %vm76, %v38, 0
  %v84 = vsel %vm76, %v39, 0
  %v87 = vsel %vm76, %v40, 0
  %v90 = vsel %vm76, %v41, 0
  %v93 = vsel %vm76, %v42, 0
  %v96 = vsel %vm76, %v43, 0
  %v99 = vsel %vm76, %v44, 0
  %101 = vmatprep.subr.bf16.mxu0 0
  %102 = vmatpush1.bf16.msra.mxu0 %v70
  %103 = vmatprep.subr.bf16.mxu0 0
  %104 = vmatpush1.bf16.msra.mxu0 %v71
  %105 = vmatprep.subr.bf16.mxu0 0
  %106 = vmatpush1.bf16.msra.mxu0 %v72
  %107 = vmatprep.subr.bf16.mxu0 0
  %108 = vmatpush1.bf16.msra.mxu0 0
  %109 = vmatprep.subr.bf16.mxu0 0
  %110 = vmatpush1.bf16.msra.mxu0 0
  %111 = vmatprep.subr.bf16.mxu0 0
  %112 = vmatpush1.bf16.msra.mxu0 0
  %113 = vmatprep.subr.bf16.mxu0 0
  %114 = vmatpush1.bf16.msra.mxu0 0
  %115 = vmatprep.subr.bf16.mxu0 0
  %116 = vmatpush1.bf16.msra.mxu0 0
  %117 = vmatprep.subr.bf16.mxu0 0
  %118 = vmatpush1.bf16.msra.mxu0 0
  %119 = vmatprep.subr.bf16.mxu0 0
  %120 = vmatpush1.bf16.msra.mxu0 0
  %121 = vmatprep.subr.bf16.mxu0 0
  %122 = vmatpush1.bf16.msra.mxu0 0
  %123 = vmatprep.subr.bf16.mxu0 0
  %124 = vmatpush1.bf16.msra.mxu0 0
  %125 = vmatprep.subr.bf16.mxu0 0
  %126 = vmatpush1.bf16.msra.mxu0 0
  %127 = vmatprep.subr.bf16.mxu0 0
  %128 = vmatpush1.bf16.msra.mxu0 0
  %129 = vmatprep.subr.bf16.mxu0 0
  %130 = vmatpush1.bf16.msra.mxu0 0
  %131 = vmatprep.subr.bf16.mxu0 0
  %132 = vmatpush1.bf16.msra.mxu0 0
  %133 = vmatprep.mubr.bf16.mxu0 0
  %134 = vmatmul.mubr.bf16.gmra.mrb[0].mxu0 %v78
  %v135 = vpop.f32.mrb[0].mxu0
  %v136 = vadd.f32 %v56, %v135
  %v137 = vpop.f32.mrb[0].mxu0
  %v138 = vpop.f32.mrb[0].mxu0
  %v139 = vadd.f32 %v56, %v138
  %v140 = vpop.f32.mrb[0].mxu0
  %141 = vmatprep.mubr.bf16.mxu0 0
  %142 = vmatmul.mubr.bf16.gmra.mrb[0].mxu0 %v81
  %v143 = vpop.f32.mrb[0].mxu0
  %v144 = vadd.f32 %v56, %v143
  %v145 = vpop.f32.mrb[0].mxu0
  %v146 = vpop.f32.mrb[0].mxu0
  %v147 = vadd.f32 %v56, %v146
  %v148 = vpop.f32.mrb[0].mxu0
  %149 = vmatprep.mubr.bf16.mxu0 0
  %150 = vmatmul.mubr.bf16.gmra.mrb[0].mxu0 %v84
  %v151 = vpop.f32.mrb[0].mxu0
  %v152 = vadd.f32 %v56, %v151
  %v153 = vpop.f32.mrb[0].mxu0
  %v154 = vpop.f32.mrb[0].mxu0
  %v155 = vadd.f32 %v56, %v154
  %v156 = vpop.f32.mrb[0].mxu0
  %157 = vmatprep.mubr.bf16.mxu0 0
  %158 = vmatmul.mubr.bf16.gmra.mrb[0].mxu0 %v87
  %v159 = vpop.f32.mrb[0].mxu0
  %v160 = vadd.f32 %v56, %v159
  %v161 = vpop.f32.mrb[0].mxu0
  %v162 = vpop.f32.mrb[0].mxu0
  %v163 = vadd.f32 %v56, %v162
  %v164 = vpop.f32.mrb[0].mxu0
  %165 = vmatprep.mubr.bf16.mxu0 0
  %166 = vmatmul.mubr.bf16.gmra.mrb[0].mxu0 %v90
  %v167 = vpop.f32.mrb[0].mxu0
  %v168 = vadd.f32 %v56, %v167
  %v169 = vpop.f32.mrb[0].mxu0
  %v170 = vpop.f32.mrb[0].mxu0
  %v171 = vadd.f32 %v56, %v170
  %v172 = vpop.f32.mrb[0].mxu0
  %173 = vmatprep.mubr.bf16.mxu0 0
  %174 = vmatmul.mubr.bf16.gmra.mrb[0].mxu0 %v93
  %v175 = vpop.f32.mrb[0].mxu0
  %v176 = vadd.f32 %v56, %v175
  %v177 = vpop.f32.mrb[0].mxu0
  %v178 = vpop.f32.mrb[0].mxu0
  %v179 = vadd.f32 %v56, %v178
  %v180 = vpop.f32.mrb[0].mxu0
  %181 = vmatprep.mubr.bf16.mxu0 0
  %182 = vmatmul.mubr.bf16.gmra.mrb[0].mxu0 %v96
  %v183 = vpop.f32.mrb[0].mxu0
  %v184 = vadd.f32 %v56, %v183
  %v185 = vpop.f32.mrb[0].mxu0
  %v186 = vpop.f32.mrb[0].mxu0
  %v187 = vadd.f32 %v56, %v186
  %v188 = vpop.f32.mrb[0].mxu0
  %189 = vmatprep.mubr.bf16.mxu0 0
  %190 = vmatmul.mubr.bf16.gmra.mrb[0].mxu0 %v99
  %v191 = vpop.f32.mrb[0].mxu0
  %v192 = vadd.f32 %v56, %v191
  %v193 = vpop.f32.mrb[0].mxu0
  %v194 = vpop.f32.mrb[0].mxu0
  %v195 = vadd.f32 %v56, %v194
  %v196 = vpop.f32.mrb[0].mxu0
  %197 = vdwg.mxu0
  %vm198 = vcmask 261120
  %v199 = vsel %vm198, %v136, 0.0
  %200 = vadd.xlane.f32.xlu0 %v199
  %v201 = vpop.xlane.xlu0 %200
  %v202 = vsel %vm198, %v139, 0.0
  %203 = vadd.xlane.f32.xlu0 %v202
  %v204 = vpop.xlane.xlu0 %203
  %v205 = vsel %vm198, %v144, 0.0
  %206 = vadd.xlane.f32.xlu0 %v205
  %v207 = vpop.xlane.xlu0 %206
  %v208 = vsel %vm198, %v147, 0.0
  %209 = vadd.xlane.f32.xlu0 %v208
  %v210 = vpop.xlane.xlu0 %209
  %v211 = vsel %vm198, %v152, 0.0
  %212 = vadd.xlane.f32.xlu0 %v211
  %v213 = vpop.xlane.xlu0 %212
  %v214 = vsel %vm198, %v155, 0.0
  %215 = vadd.xlane.f32.xlu0 %v214
  %v216 = vpop.xlane.xlu0 %215
  %v217 = vsel %vm198, %v160, 0.0
  %218 = vadd.xlane.f32.xlu0 %v217
  %v219 = vpop.xlane.xlu0 %218
  %v220 = vsel %vm198, %v163, 0.0
  %221 = vadd.xlane.f32.xlu0 %v220
  %v222 = vpop.xlane.xlu0 %221
  %v223 = vsel %vm198, %v168, 0.0
  %224 = vadd.xlane.f32.xlu0 %v223
  %v225 = vpop.xlane.xlu0 %224
  %v226 = vsel %vm198, %v171, 0.0
  %227 = vadd.xlane.f32.xlu0 %v226
  %v228 = vpop.xlane.xlu0 %227
  %v229 = vsel %vm198, %v176, 0.0
  %230 = vadd.xlane.f32.xlu0 %v229
  %v231 = vpop.xlane.xlu0 %230
  %v232 = vsel %vm198, %v179, 0.0
  %233 = vadd.xlane.f32.xlu0 %v232
  %v234 = vpop.xlane.xlu0 %233
  %v235 = vsel %vm198, %v184, 0.0
  %236 = vadd.xlane.f32.xlu0 %v235
  %v237 = vpop.xlane.xlu0 %236
  %v238 = vsel %vm198, %v187, 0.0
  %239 = vadd.xlane.f32.xlu0 %v238
  %v240 = vpop.xlane.xlu0 %239
  %v241 = vsel %vm198, %v192, 0.0
  %242 = vadd.xlane.f32.xlu0 %v241
  %v243 = vpop.xlane.xlu0 %242
  %v244 = vsel %vm198, %v195, 0.0
  %245 = vadd.xlane.f32.xlu0 %v244
  %v246 = vpop.xlane.xlu0 %245
  %v247 = vrcp.pop 32.0
  %v248 = vmul.f32 %v201, %v247
  %v249 = vmul.f32 %v204, %v247
  %v250 = vmul.f32 %v207, %v247
  %v251 = vmul.f32 %v210, %v247
  %v252 = vmul.f32 %v213, %v247
  %v253 = vmul.f32 %v216, %v247
  %v254 = vmul.f32 %v219, %v247
  %v255 = vmul.f32 %v222, %v247
  %v256 = vmul.f32 %v225, %v247
  %v257 = vmul.f32 %v228, %v247
  %v258 = vmul.f32 %v231, %v247
  %v259 = vmul.f32 %v234, %v247
  %v260 = vmul.f32 %v237, %v247
  %v261 = vmul.f32 %v240, %v247
  %v262 = vmul.f32 %v243, %v247
  %v263 = vmul.f32 %v246, %v247
  %v264 = vsub.f32 %v136, %v248
  %v265 = vsub.f32 %v139, %v249
  %v266 = vsub.f32 %v144, %v250
  %v267 = vsub.f32 %v147, %v251
  %v268 = vsub.f32 %v152, %v252
  %v269 = vsub.f32 %v155, %v253
  %v270 = vsub.f32 %v160, %v254
  %v271 = vsub.f32 %v163, %v255
  %v272 = vsub.f32 %v168, %v256
  %v273 = vsub.f32 %v171, %v257
  %v274 = vsub.f32 %v176, %v258
  %v275 = vsub.f32 %v179, %v259
  %v276 = vsub.f32 %v184, %v260
  %v277 = vsub.f32 %v187, %v261
  %v278 = vsub.f32 %v192, %v262
  %v279 = vsub.f32 %v195, %v263
  %v280 = vmul.f32 %v264, %v264
  %v281 = vmul.f32 %v265, %v265
  %v282 = vmul.f32 %v266, %v266
  %v283 = vmul.f32 %v267, %v267
  %v284 = vmul.f32 %v268, %v268
  %v285 = vmul.f32 %v269, %v269
  %v286 = vmul.f32 %v270, %v270
  %v287 = vmul.f32 %v271, %v271
  %v288 = vmul.f32 %v272, %v272
  %v289 = vmul.f32 %v273, %v273
  %v290 = vmul.f32 %v274, %v274
  %v291 = vmul.f32 %v275, %v275
  %v292 = vmul.f32 %v276, %v276
  %v293 = vmul.f32 %v277, %v277
  %v294 = vmul.f32 %v278, %v278
  %v295 = vmul.f32 %v279, %v279
  %v296 = vsel %vm198, %v280, 0.0
  %297 = vadd.xlane.f32.xlu0 %v296
  %v298 = vpop.xlane.xlu0 %297
  %v299 = vsel %vm198, %v281, 0.0
  %300 = vadd.xlane.f32.xlu0 %v299
  %v301 = vpop.xlane.xlu0 %300
  %v302 = vsel %vm198, %v282, 0.0
  %303 = vadd.xlane.f32.xlu0 %v302
  %v304 = vpop.xlane.xlu0 %303
  %v305 = vsel %vm198, %v283, 0.0
  %306 = vadd.xlane.f32.xlu0 %v305
  %v307 = vpop.xlane.xlu0 %306
  %v308 = vsel %vm198, %v284, 0.0
  %309 = vadd.xlane.f32.xlu0 %v308
  %v310 = vpop.xlane.xlu0 %309
  %v311 = vsel %vm198, %v285, 0.0
  %312 = vadd.xlane.f32.xlu0 %v311
  %v313 = vpop.xlane.xlu0 %312
  %v314 = vsel %vm198, %v286, 0.0
  %315 = vadd.xlane.f32.xlu0 %v314
  %v316 = vpop.xlane.xlu0 %315
  %v317 = vsel %vm198, %v287, 0.0
  %318 = vadd.xlane.f32.xlu0 %v317
  %v319 = vpop.xlane.xlu0 %318
  %v320 = vsel %vm198, %v288, 0.0
  %321 = vadd.xlane.f32.xlu0 %v320
  %v322 = vpop.xlane.xlu0 %321
  %v323 = vsel %vm198, %v289, 0.0
  %324 = vadd.xlane.f32.xlu0 %v323
  %v325 = vpop.xlane.xlu0 %324
  %v326 = vsel %vm198, %v290, 0.0
  %327 = vadd.xlane.f32.xlu0 %v326
  %v328 = vpop.xlane.xlu0 %327
  %v329 = vsel %vm198, %v291, 0.0
  %330 = vadd.xlane.f32.xlu0 %v329
  %v331 = vpop.xlane.xlu0 %330
  %v332 = vsel %vm198, %v292, 0.0
  %333 = vadd.xlane.f32.xlu0 %v332
  %v334 = vpop.xlane.xlu0 %333
  %v335 = vsel %vm198, %v293, 0.0
  %336 = vadd.xlane.f32.xlu0 %v335
  %v337 = vpop.xlane.xlu0 %336
  %v338 = vsel %vm198, %v294, 0.0
  %339 = vadd.xlane.f32.xlu0 %v338
  %v340 = vpop.xlane.xlu0 %339
  %v341 = vsel %vm198, %v295, 0.0
  %342 = vadd.xlane.f32.xlu0 %v341
  %v343 = vpop.xlane.xlu0 %342
  %v344 = vmul.f32 %v298, %v247
  %v345 = vmul.f32 %v301, %v247
  %v346 = vmul.f32 %v304, %v247
  %v347 = vmul.f32 %v307, %v247
  %v348 = vmul.f32 %v310, %v247
  %v349 = vmul.f32 %v313, %v247
  %v350 = vmul.f32 %v316, %v247
  %v351 = vmul.f32 %v319, %v247
  %v352 = vmul.f32 %v322, %v247
  %v353 = vmul.f32 %v325, %v247
  %v354 = vmul.f32 %v328, %v247
  %v355 = vmul.f32 %v331, %v247
  %v356 = vmul.f32 %v334, %v247
  %v357 = vmul.f32 %v337, %v247
  %v358 = vmul.f32 %v340, %v247
  %v359 = vmul.f32 %v343, %v247
  %v360 = vadd.f32 %v344, 1e-05
  %v361 = vadd.f32 %v345, 1e-05
  %v362 = vadd.f32 %v346, 1e-05
  %v363 = vadd.f32 %v347, 1e-05
  %v364 = vadd.f32 %v348, 1e-05
  %v365 = vadd.f32 %v349, 1e-05
  %v366 = vadd.f32 %v350, 1e-05
  %v367 = vadd.f32 %v351, 1e-05
  %v368 = vadd.f32 %v352, 1e-05
  %v369 = vadd.f32 %v353, 1e-05
  %v370 = vadd.f32 %v354, 1e-05
  %v371 = vadd.f32 %v355, 1e-05
  %v372 = vadd.f32 %v356, 1e-05
  %v373 = vadd.f32 %v357, 1e-05
  %v374 = vadd.f32 %v358, 1e-05
  %v375 = vadd.f32 %v359, 1e-05
  %v376 = vrsqrt.pop %v360
  %v377 = vrsqrt.pop %v361
  %v378 = vrsqrt.pop %v362
  %v379 = vrsqrt.pop %v363
  %v380 = vrsqrt.pop %v364
  %v381 = vrsqrt.pop %v365
  %v382 = vrsqrt.pop %v366
  %v383 = vrsqrt.pop %v367
  %v384 = vrsqrt.pop %v368
  %v385 = vrsqrt.pop %v369
  %v386 = vrsqrt.pop %v370
  %v387 = vrsqrt.pop %v371
  %v388 = vrsqrt.pop %v372
  %v389 = vrsqrt.pop %v373
  %v390 = vrsqrt.pop %v374
  %v391 = vrsqrt.pop %v375
  %v392 = vmul.f32 %v264, %v376
  %v393 = vmul.f32 %v265, %v377
  %v394 = vmul.f32 %v266, %v378
  %v395 = vmul.f32 %v267, %v379
  %v396 = vmul.f32 %v268, %v380
  %v397 = vmul.f32 %v269, %v381
  %v398 = vmul.f32 %v270, %v382
  %v399 = vmul.f32 %v271, %v383
  %v400 = vmul.f32 %v272, %v384
  %v401 = vmul.f32 %v273, %v385
  %v402 = vmul.f32 %v274, %v386
  %v403 = vmul.f32 %v275, %v387
  %v404 = vmul.f32 %v276, %v388
  %v405 = vmul.f32 %v277, %v389
  %v406 = vmul.f32 %v278, %v390
  %v407 = vmul.f32 %v279, %v391
  %v408 = vld [vmem:[%s3] sm:$0x1]
  %v410 = vlaneseq
  %v411 = vshrl.u32 %v410, 7
  %v412 = vsub.s32 0, %v411
  %v413 = vrot.slane %v408, %v412
  %v415 = vmul.f32 %v392, %v413
  %v416 = vmul.f32 %v393, %v413
  %v417 = vmul.f32 %v394, %v413
  %v418 = vmul.f32 %v395, %v413
  %v419 = vmul.f32 %v396, %v413
  %v420 = vmul.f32 %v397, %v413
  %v421 = vmul.f32 %v398, %v413
  %v422 = vmul.f32 %v399, %v413
  %v423 = vmul.f32 %v400, %v413
  %v424 = vmul.f32 %v401, %v413
  %v425 = vmul.f32 %v402, %v413
  %v426 = vmul.f32 %v403, %v413
  %v427 = vmul.f32 %v404, %v413
  %v428 = vmul.f32 %v405, %v413
  %v429 = vmul.f32 %v406, %v413
  %v430 = vmul.f32 %v407, %v413
  %v431 = vld [vmem:[%s4] sm:$0x1]
  %v433 = vlaneseq
  %v434 = vshrl.u32 %v433, 7
  %v435 = vsub.s32 0, %v434
  %v436 = vrot.slane %v431, %v435
  %v438 = vadd.f32 %v415, %v436
  %v439 = vadd.f32 %v416, %v436
  %v440 = vadd.f32 %v417, %v436
  %v441 = vadd.f32 %v418, %v436
  %v442 = vadd.f32 %v419, %v436
  %v443 = vadd.f32 %v420, %v436
  %v444 = vadd.f32 %v421, %v436
  %v445 = vadd.f32 %v422, %v436
  %v446 = vadd.f32 %v423, %v436
  %v447 = vadd.f32 %v424, %v436
  %v448 = vadd.f32 %v425, %v436
  %v449 = vadd.f32 %v426, %v436
  %v450 = vadd.f32 %v427, %v436
  %v451 = vadd.f32 %v428, %v436
  %v452 = vadd.f32 %v429, %v436
  %v453 = vadd.f32 %v430, %v436
  %454 = vst.msk [vmem:[%s5] sm:$0xff] %vm198, %v438
  %455 = vst.msk [vmem:[%s5 + $0x8] sm:$0xff] %vm198, %v439
  %456 = vst.msk [vmem:[%s5 + $0x10] sm:$0xff] %vm198, %v440
  %457 = vst.msk [vmem:[%s5 + $0x18] sm:$0xff] %vm198, %v441
  %458 = vst.msk [vmem:[%s5 + $0x20] sm:$0xff] %vm198, %v442
  %459 = vst.msk [vmem:[%s5 + $0x28] sm:$0xff] %vm198, %v443
  %460 = vst.msk [vmem:[%s5 + $0x30] sm:$0xff] %vm198, %v444
  %461 = vst.msk [vmem:[%s5 + $0x38] sm:$0xff] %vm198, %v445
  %462 = vst.msk [vmem:[%s5 + $0x40] sm:$0xff] %vm198, %v446
  %463 = vst.msk [vmem:[%s5 + $0x48] sm:$0xff] %vm198, %v447
  %464 = vst.msk [vmem:[%s5 + $0x50] sm:$0xff] %vm198, %v448
  %465 = vst.msk [vmem:[%s5 + $0x58] sm:$0xff] %vm198, %v449
  %466 = vst.msk [vmem:[%s5 + $0x60] sm:$0xff] %vm198, %v450
  %467 = vst.msk [vmem:[%s5 + $0x68] sm:$0xff] %vm198, %v451
  %468 = vst.msk [vmem:[%s5 + $0x70] sm:$0xff] %vm198, %v452
  %469 = vst.msk [vmem:[%s5 + $0x78] sm:$0xff] %vm198, %v453
  // Predicated region
  $region22: #{linear_pallas.1} parent=0 // pred_check
    _
  $region23: #{linear_pallas.1} parent=0 // pred_check_branch
    %471 = sbr.rel (0) target = $region25
  $region24: #{linear_pallas.1} parent=0 // pred_region
    _
  $region25: #{linear_pallas.1} parent=0 // pred_fallthru
    _
  // Predicated region
  $region26: #{linear_pallas.1} parent=0 // pred_check
    _
  $region27: #{linear_pallas.1} parent=0 // pred_check_branch
    %473 = sbr.rel (0) target = $region29
  $region28: #{linear_pallas.1} parent=0 // pred_region
    _
  $region29: #{linear_pallas.1} parent=0 // pred_fallthru
    _

</llo_original>
